<compile_context>
chip_gen: v5e
topology: v5e:2x2
jax: 0.10.0
libtpu: 0.0.40
codegen_flags: <defaults>
</compile_context>

<pallas_src>
import jax
import jax.numpy as jnp
from jax.experimental import pallas as pl
from jax.experimental.pallas import tpu as pltpu


def _round_up(v, m):
    return ((v + m - 1) // m) * m


def conv_gemm_kernel(w_ref, cols_ref, bias_ref, o_ref):
    """relu(W @ cols + b) for one (Cout, tile_m) output tile.

    w_ref:    (Cout, K_p)    bf16 BN-folded weights (K = kh*kw*Cin, zero-padded)
    cols_ref: (K_p, tile_m)  bf16 im2col columns (output pixels on lanes)
    bias_ref: (Cout, 1)      f32 beta - running_mean * scale
    o_ref:    (Cout, tile_m) output tile — already in NCHW order
    """
    acc = jnp.dot(w_ref[...], cols_ref[...],
                  preferred_element_type=jnp.float32)      # single MXU pass, f32 acc
    o_ref[...] = jnp.maximum(acc + bias_ref[...], 0.0).astype(o_ref.dtype)


def conv_bn_relu(x_nchw, weight_oihw, gamma, beta, running_mean, running_var,
                 *, stride=1, padding=None, groups=1, eps=1e-5):
    """Pallas-backed Conv(in_c, out_c, k).forward: conv -> eval-mode BN -> ReLU."""
    c_out, c_in, kh, kw = weight_oihw.shape
    n, c, h, w = x_nchw.shape
    assert c == c_in
    # TODO(synk): grouped convolution (groups > 1) is not implemented.
    assert groups == 1
    s = stride
    p = (kh // 2) if padding is None else padding            # autopad (== nn.Conv2d)

    h_out = (h + 2 * p - kh) // s + 1
    w_out = (w + 2 * p - kw) // s + 1
    m = h_out * w_out                                        # flattened output pixels
    k = kh * kw * c_in                                       # joint im2col contraction
    k_p = _round_up(k, 8)                                    # sublane-align K only

    # M tile: multiple of 8, capped at 1024; odd sizes padded up + cropped later.
    tile_m = min(1024, _round_up(m, 8))
    m_p = _round_up(m, tile_m)

    # ---- trace-time / XLA glue: BN folding + joint-K im2col (layout only) ----
    scale = gamma / jnp.sqrt(running_var + eps)              # (Cout,)
    bias = beta - running_mean * scale                       # (Cout,)
    # (Cout, Cin, kh, kw) -> (Cout, kh, kw, Cin) -> (Cout, K); fold BN scale in.
    w_t = jnp.transpose(weight_oihw, (0, 2, 3, 1)).reshape(c_out, k) * scale[:, None]
    w_t = jnp.pad(w_t, ((0, 0), (0, k_p - k))).astype(jnp.bfloat16)
    bias2 = bias.reshape(c_out, 1).astype(jnp.float32)

    xp = jnp.pad(x_nchw, ((0, 0), (0, 0), (p, p), (p, p)))   # spatial zero pad, NCHW
    # im2col with K ordered (i, j, ci) to match w_t; output pixels stay minor so
    # they land on lanes: cols[n, (i*kw+j)*Cin+ci, y*Wo+x] = xp[n, ci, y*s+i, x*s+j]
    cols = jnp.concatenate(
        [xp[:, :, i:i + (h_out - 1) * s + 1:s, j:j + (w_out - 1) * s + 1:s]
         for i in range(kh) for j in range(kw)],
        axis=1).reshape(n, k, m)
    cols = jnp.pad(cols, ((0, 0), (0, k_p - k), (0, m_p - m))).astype(jnp.bfloat16)

    out_flat = pl.pallas_call(
        conv_gemm_kernel,
        out_shape=jax.ShapeDtypeStruct((n, c_out, m_p), x_nchw.dtype),
        grid_spec=pltpu.PrefetchScalarGridSpec(
            num_scalar_prefetch=0,
            grid=(n, m_p // tile_m),
            in_specs=[
                pl.BlockSpec((c_out, k_p), lambda b, r: (0, 0)),          # weights (~1 KiB)
                pl.BlockSpec((None, k_p, tile_m), lambda b, r: (b, 0, r)),  # cols tile
                pl.BlockSpec((c_out, 1), lambda b, r: (0, 0)),            # folded-BN bias
            ],
            out_specs=pl.BlockSpec((None, c_out, tile_m), lambda b, r: (b, 0, r)),
        ),
        compiler_params=pltpu.CompilerParams(
            # Nothing large is resident across either axis -> both megacore-shardable;
            # per-step VMEM is O(tile_m * K), independent of image size (v7x-safe).
            dimension_semantics=("parallel", "parallel"),
            vmem_limit_bytes=32 * 1024 * 1024,
        ),
    )(w_t, cols, bias2)

    # Crop M padding (no-op when m == m_p).  Output is already NCHW-ordered, so
    # the reshape is layout-free: no channel-pad slice, no XLA transpose pass.
    return out_flat[:, :, :m].reshape(n, c_out, h_out, w_out)


if __name__ == "__main__":
    # Module config: Conv(in_channel=4, out_channels=8, kernel_size=3) -> BN -> ReLU
    N, C_IN, H, W = 2, 4, 16, 16
    C_OUT, KSZ = 8, 3

    key = jax.random.PRNGKey(0)
    kx, kw_ = jax.random.split(key)
    x = jax.random.normal(kx, (N, C_IN, H, W), dtype=jnp.float32)
    weight = jax.random.normal(kw_, (C_OUT, C_IN, KSZ, KSZ), dtype=jnp.float32) * 0.1

    # Deterministic BatchNorm2d parameters / running stats (inference mode).
    gamma = jnp.linspace(0.5, 1.5, C_OUT, dtype=jnp.float32)
    beta = jnp.linspace(-0.1, 0.1, C_OUT, dtype=jnp.float32)
    running_mean = jnp.linspace(-0.2, 0.2, C_OUT, dtype=jnp.float32)
    running_var = jnp.linspace(0.5, 2.0, C_OUT, dtype=jnp.float32)
    eps = 1e-5

    out = conv_bn_relu(x, weight, gamma, beta, running_mean, running_var,
                       stride=1, padding=None, groups=1, eps=eps)
    out = jax.block_until_ready(out)
    assert out.shape == (N, C_OUT, H, W)

    # Reference: same BN fold and the same bf16 operand rounding, f32 conv/accum.
    scale = gamma / jnp.sqrt(running_var + eps)
    bias = beta - running_mean * scale
    x_b = x.astype(jnp.bfloat16).astype(jnp.float32)
    w_b = (weight * scale[:, None, None, None]).astype(jnp.bfloat16).astype(jnp.float32)
    ref = jax.lax.conv_general_dilated(
        x_b, w_b, window_strides=(1, 1), padding=((KSZ // 2, KSZ // 2),) * 2,
        dimension_numbers=("NCHW", "OIHW", "NCHW"))
    ref = jnp.maximum(ref + bias[None, :, None, None], 0.0)

    assert jnp.allclose(out, ref, atol=1e-2, rtol=1e-2), \
        float(jnp.max(jnp.abs(out - ref)))

    print("KERNEL_OK")
</pallas_src>

<mosaic_0001>
module attributes {stable_mosaic.version = 11 : i64} {
  func.func @conv_gemm_kernel(%arg0: i32, %arg1: i32, %arg2: memref<8x40xbf16, #tpu.memory_space<vmem>>, %arg3: memref<1x40x256xbf16, #tpu.memory_space<vmem>>, %arg4: memref<8x1xf32, #tpu.memory_space<vmem>>, %arg5: memref<1x8x256xf32, #tpu.memory_space<vmem>>) attributes {dimension_semantics = [#tpu.dimension_semantics<parallel>, #tpu.dimension_semantics<parallel>], iteration_bounds = array<i64: 2, 1>, scalar_prefetch = 0 : i64, scratch_operands = 0 : i64, tpu.core_type = #tpu.core_type<tc>, window_params = [{pipeline_mode = #tpu.pipeline_mode<synchronous>, transform_indices = @transform_0, window_bounds = array<i64: 8, 40>}, {transform_indices = @transform_1, window_bounds = array<i64: 1, 40, 256>}, {pipeline_mode = #tpu.pipeline_mode<synchronous>, transform_indices = @transform_2, window_bounds = array<i64: 8, 1>}, {transform_indices = @transform_3, window_bounds = array<i64: 1, 8, 256>}]} {
    %c0 = arith.constant 0 : index
    %c0_0 = arith.constant 0 : index
    %0 = vector.load %arg2[%c0, %c0_0] : memref<8x40xbf16, #tpu.memory_space<vmem>>, vector<8x40xbf16>
    %c0_1 = arith.constant 0 : index
    %c0_2 = arith.constant 0 : index
    %c0_3 = arith.constant 0 : index
    %1 = vector.load %arg3[%c0_1, %c0_2, %c0_3] : memref<1x40x256xbf16, #tpu.memory_space<vmem>>, vector<1x40x256xbf16>
    %2 = vector.shape_cast %1 : vector<1x40x256xbf16> to vector<40x256xbf16>
    %cst = arith.constant dense<0.000000e+00> : vector<8x256xf32>
    %3 = tpu.matmul %0, %2, %cst {dimension_numbers = #tpu.dot_dimension_numbers<[1], [0], [0], [1], [0, 0, 1, 1], [], []>} : vector<8x40xbf16>, vector<40x256xbf16>, vector<8x256xf32> -> vector<8x256xf32>
    %c0_4 = arith.constant 0 : index
    %c0_5 = arith.constant 0 : index
    %4 = vector.load %arg4[%c0_4, %c0_5] : memref<8x1xf32, #tpu.memory_space<vmem>>, vector<8x1xf32>
    %5 = vector.broadcast %4 : vector<8x1xf32> to vector<8x256xf32>
    %6 = arith.addf %3, %5 : vector<8x256xf32>
    %cst_6 = arith.constant 0.000000e+00 : f32
    %7 = vector.broadcast %cst_6 : f32 to vector<8x256xf32>
    %8 = arith.maximumf %6, %7 : vector<8x256xf32>
    %c0_7 = arith.constant 0 : index
    %c0_8 = arith.constant 0 : index
    %c0_9 = arith.constant 0 : index
    %9 = vector.load %arg5[%c0_7, %c0_8, %c0_9] : memref<1x8x256xf32, #tpu.memory_space<vmem>>, vector<1x8x256xf32>
    %10 = vector.shape_cast %9 : vector<1x8x256xf32> to vector<8x256xf32>
    %11 = vector.shape_cast %8 : vector<8x256xf32> to vector<1x8x256xf32>
    tpu.vector_store %arg5[%c0_7, %c0_8, %c0_9], %11 {strides = array<i32>} : memref<1x8x256xf32, #tpu.memory_space<vmem>>, vector<1x8x256xf32>,
    return
  }
  func.func @transform_0(%arg0: i32, %arg1: i32) -> (i32, i32) {
    %c0_i32 = arith.constant 0 : i32
    %c0_i32_0 = arith.constant 0 : i32
    %c0_i32_1 = arith.constant 0 : i32
    return %c0_i32, %c0_i32_0 : i32, i32
  }
  func.func @transform_1(%arg0: i32, %arg1: i32) -> (i32, i32, i32) {
    %c0_i32 = arith.constant 0 : i32
    %c0_i32_0 = arith.constant 0 : i32
    return %arg0, %c0_i32, %arg1 : i32, i32, i32
  }
  func.func @transform_2(%arg0: i32, %arg1: i32) -> (i32, i32) {
    %c0_i32 = arith.constant 0 : i32
    %c0_i32_0 = arith.constant 0 : i32
    %c0_i32_1 = arith.constant 0 : i32
    return %c0_i32, %c0_i32_0 : i32, i32
  }
  func.func @transform_3(%arg0: i32, %arg1: i32) -> (i32, i32, i32) {
    %c0_i32 = arith.constant 0 : i32
    %c0_i32_0 = arith.constant 0 : i32
    return %arg0, %c0_i32, %arg1 : i32, i32, i32
  }
}

</mosaic_0001>

<llo_original>
// kernel: tpu_custom_call.1
$region0: #{tpu_custom_call.1}
  #allocation0 [shape = 'u32[]', space=smem, size = 0x4, offset = 0x4, fixed_abs, tag = 'smem constant byte address 0x4 - core index']
  #allocation1 [shape = 'u32[72,128]{1,0:T(1,128)}', space=vmem, size = 0x9000, scoped, tag = 'internal scratch']
  %s0 = inlined_call_operand.vmem [shape: bf16[8,40], index: 0, kind: input, shape index: {}]
  %s1 = inlined_call_operand.hbm [shape: bf16[2,40,256], index: 1, kind: input, shape index: {}]
  %s2 = inlined_call_operand.vmem [shape: f32[8,1], index: 2, kind: input, shape index: {}]
  %s3 = inlined_call_operand.hbm [shape: f32[2,8,256], index: 3, kind: output, shape index: {}]
  %s4 = sld [smem:[#allocation0]]
  $region49: #{tpu_custom_call.1} parent=0
    _
  %s6 = ssub.s32 1, %s4
  %s7 = scalar_select 0, %s6, %s4
  $region1: #{tpu_custom_call.1} parent=0
    #allocation2 [shape = 'u8[40960]{0}', space=vmem, size = 0xa000, scoped, tag = 'input window, operand 1']
    #allocation3 [shape = 's32[2]{0}', space=sflag, size = 0x8, scoped, tag = 'scoped memory for tpu_custom_call.1']
    #allocation4 [shape = 's32[2]{0}', space=sflag, size = 0x8, scoped, tag = 'scoped memory for tpu_custom_call.1']
    #allocation5 [shape = 'u8[16384]{0}', space=vmem, size = 0x4000, scoped, tag = 'output window, operand 0']
    %8 = vsyncpa [#allocation3], 0
    %s9 = scalar_lea.sflag [#allocation3], 1
    %10 = vsyncpa %s9, 0
    %11 = vsyncpa [#allocation4], 0
    %s12 = scalar_lea.sflag [#allocation4], 1
    %13 = vsyncpa %s12, 0
    loop: start=0, step=1, limit=4
    $region2: #{tpu_custom_call.1} parent=1 // loop_pre_header
      _
    $region3: #{tpu_custom_call.1} parent=1 // loop_header
      %s15 = sphi 0, %s19
      %p16 = scmp.ge.s32.totalorder %s15, 4
      %s22 = sphi 0, %s34
      %s23 = sphi 0, %s30
      %s24 = sphi 0, %s22
      %s25 = sphi 0, %s23
      %s26 = sphi 0, %s24
      %s27 = sphi 0, %s25
      %s35 = sphi 0, %s35
      %s37 = sphi 0, %s35
      %s38 = sphi 0, %s37
      %s52 = sphi 0, %s38
      %s60 = sphi 0, %s62
      %s63 = sphi 0, %s60
      %s64 = sphi 0, %s63
      %s80 = sphi 0, %s64
      %s84 = sphi 0, %s84
      %s86 = sphi 0, %s84
      %s87 = sphi 0, %s86
      %s101 = sphi 0, %s87
      %s109 = sphi 0, %s111
      %s112 = sphi 0, %s109
      %s113 = sphi 0, %s112
      %s129 = sphi 0, %s113
    $region4: #{tpu_custom_call.1} parent=1 // loop_header_branch
      %18 = sbr.rel (%p16) target = $region8
    $region5: #{tpu_custom_call.1} parent=1 // loop_body
      %s20 = ssub.s32 %s15, 1
      %s21 = ssub.s32 %s15, 2
      %s28 = sadd.s32 1, %s23
      %p29 = scmp.ge.s32.totalorder %s28, 1
      %s30 = scalar_select %p29, 0, %s28
      %s31 = sadd.s32 1, %s22
      %s32 = scalar_select %p29, %s31, %s22
      %p33 = scmp.ge.s32.totalorder %s32, 2
      %s34 = scalar_select %p33, 0, %s32
      %s36 = sadd.s32 %s35, 1
      %p39 = scmp.eq.s32.totalorder %s15, 1
      %p40 = scmp.ne.s32.totalorder %s35, %s37
      %p41 = scmp.eq.s32.totalorder %s15, 0
      %p42 = por %p40, %p41
      %p43 = scmp.ne.s32.totalorder %s35, %s37
      %p44 = scmp.eq.s32.totalorder %s20, 1
      %p45 = por %p43, %p44
      %p46 = scmp.ne.s32.totalorder %s37, %s38
      %p47 = scmp.eq.s32.totalorder %s20, 0
      %p48 = por %p46, %p47
      %p49 = scmp.ne.s32.totalorder %s37, %s38
      %p50 = scmp.eq.s32.totalorder %s21, 1
      %p51 = por %p49, %p50
      %p53 = scmp.ne.s32.totalorder %s38, %s52
      %p54 = scmp.eq.s32.totalorder %s21, 0
      %p55 = por %p53, %p54
      %s56 = ssub.s32 %s22, %s34
      %s57 = ssub.s32 %s23, %s30
      %s58 = sor.u32 %s56, %s57
      %p59 = scmp.eq.s32.totalorder %s58, 0
      %s61 = sadd.s32 %s60, 1
      %s62 = scalar_select %p59, %s60, %s61
      %p65 = pneg %p59
      %p66 = scmp.eq.s32.totalorder %s15, 1
      %p67 = por %p65, %p66
      %p68 = scmp.ne.s32.totalorder %s60, %s63
      %p69 = scmp.eq.s32.totalorder %s15, 0
      %p70 = por %p68, %p69
      %p71 = scmp.ne.s32.totalorder %s60, %s63
      %p72 = scmp.eq.s32.totalorder %s20, 1
      %p73 = por %p71, %p72
      %p74 = scmp.ne.s32.totalorder %s63, %s64
      %p75 = scmp.eq.s32.totalorder %s20, 0
      %p76 = por %p74, %p75
      %p77 = scmp.ne.s32.totalorder %s63, %s64
      %p78 = scmp.eq.s32.totalorder %s21, 1
      %p79 = por %p77, %p78
      %p81 = scmp.ne.s32.totalorder %s64, %s80
      %p82 = scmp.eq.s32.totalorder %s21, 0
      %p83 = por %p81, %p82
      %s85 = sadd.s32 %s84, 1
      %p88 = scmp.eq.s32.totalorder %s15, 1
      %p89 = scmp.ne.s32.totalorder %s84, %s86
      %p90 = scmp.eq.s32.totalorder %s15, 0
      %p91 = por %p89, %p90
      %p92 = scmp.ne.s32.totalorder %s84, %s86
      %p93 = scmp.eq.s32.totalorder %s20, 1
      %p94 = por %p92, %p93
      %p95 = scmp.ne.s32.totalorder %s86, %s87
      %p96 = scmp.eq.s32.totalorder %s20, 0
      %p97 = por %p95, %p96
      %p98 = scmp.ne.s32.totalorder %s86, %s87
      %p99 = scmp.eq.s32.totalorder %s21, 1
      %p100 = por %p98, %p99
      %p102 = scmp.ne.s32.totalorder %s87, %s101
      %p103 = scmp.eq.s32.totalorder %s21, 0
      %p104 = por %p102, %p103
      %s105 = ssub.s32 %s22, %s34
      %s106 = ssub.s32 %s23, %s30
      %s107 = sor.u32 %s105, %s106
      %p108 = scmp.eq.s32.totalorder %s107, 0
      %s110 = sadd.s32 %s109, 1
      %s111 = scalar_select %p108, %s109, %s110
      %p114 = pneg %p108
      %p115 = scmp.eq.s32.totalorder %s15, 1
      %p116 = por %p114, %p115
      %p117 = scmp.ne.s32.totalorder %s109, %s112
      %p118 = scmp.eq.s32.totalorder %s15, 0
      %p119 = por %p117, %p118
      %p120 = scmp.ne.s32.totalorder %s109, %s112
      %p121 = scmp.eq.s32.totalorder %s20, 1
      %p122 = por %p120, %p121
      %p123 = scmp.ne.s32.totalorder %s112, %s113
      %p124 = scmp.eq.s32.totalorder %s20, 0
      %p125 = por %p123, %p124
      %p126 = scmp.ne.s32.totalorder %s112, %s113
      %p127 = scmp.eq.s32.totalorder %s21, 1
      %p128 = por %p126, %p127
      %p130 = scmp.ne.s32.totalorder %s113, %s129
      %p131 = scmp.eq.s32.totalorder %s21, 0
      %p132 = por %p130, %p131
      %p133 = scmp.le.s32.totalorder 1, %s15
      %p134 = scmp.lt.s32.totalorder %s15, 3
      %p135 = pnand %p133, %p134
      %p136 = pneg %p135
      // Predicated region
      $region9: #{tpu_custom_call.1} parent=5 // pred_check
        _
      $region10: #{tpu_custom_call.1} parent=5 // pred_check_branch
        %138 = sbr.rel (%p135) target = $region12
      $region11: #{tpu_custom_call.1} parent=5 // pred_region
        %s139 = ssub.s32 %s15, 1
        // Predicated region
        $region13: #{tpu_custom_call.1} parent=11 // pred_check
          %p140 = pneg %p48
        $region14: #{tpu_custom_call.1} parent=11 // pred_check_branch
          %142 = sbr.rel (%p140) target = $region16
        $region15: #{tpu_custom_call.1} parent=11 // pred_region
          _
        $region16: #{tpu_custom_call.1} parent=11 // pred_fallthru
          _
        // Predicated region
        $region17: #{tpu_custom_call.1} parent=11 // pred_check
          %p143 = pneg %p97
        $region18: #{tpu_custom_call.1} parent=11 // pred_check_branch
          %145 = sbr.rel (%p143) target = $region20
        $region19: #{tpu_custom_call.1} parent=11 // pred_region
          _
        $region20: #{tpu_custom_call.1} parent=11 // pred_fallthru
          _
      $region12: #{tpu_custom_call.1} parent=5 // pred_fallthru
        _
      %p146 = scmp.lt.s32.totalorder %s15, 2
      // Predicated region
      $region21: #{tpu_custom_call.1} parent=5 // pred_check
        %p147 = pneg %p146
      $region22: #{tpu_custom_call.1} parent=5 // pred_check_branch
        %149 = sbr.rel (%p147) target = $region24
      $region23: #{tpu_custom_call.1} parent=5 // pred_region
        // Predicated region
        $region25: #{tpu_custom_call.1} parent=23 // pred_check
          %p150 = pneg %p70
        $region26: #{tpu_custom_call.1} parent=23 // pred_check_branch
          %152 = sbr.rel (%p150) target = $region28
        $region27: #{tpu_custom_call.1} parent=23 // pred_region
          %s153 = sand.u32 %s60, 1
          %s154 = scalar_lea.sflag [#allocation3], %s153
          %s155 = sand.u32 %s60, 1
          %s156 = smul.addr %s155, 40
          %s157 = scalar_lea.vmem [#allocation2], %s156
          %s158 = smul.u32 2, %s23
          %160 = vsyncadd %s154, 0
          %s161 = smul.addr %s22, 10
          %s162 = sadd.s32 %s158, %s161
          %s163 = smul.addr %s162, 4
          %s164 = scalar_lea.hbm %s1, %s163
          %s165 = sshll.u32 %s164, 4
          %s166 = int_to_ptr.hbm [resolvable:$true] %s165
          %s167 = sshll.u32 %s157, 4
          %s168 = int_to_ptr.vmem [resolvable:$true] %s167
          %173 = dma.hbm_to_vmem [thread:$0]  %s166, 640, %s168, %s154, 128, 128, 8
        $region28: #{tpu_custom_call.1} parent=23 // pred_fallthru
          _
      $region24: #{tpu_custom_call.1} parent=5 // pred_fallthru
        _
      %p174 = scmp.le.s32.totalorder 1, %s15
      %p175 = scmp.lt.s32.totalorder %s15, 3
      %p176 = pnand %p174, %p175
      %p177 = pneg %p176
      // Predicated region
      $region29: #{tpu_custom_call.1} parent=5 // pred_check
        _
      $region30: #{tpu_custom_call.1} parent=5 // pred_check_branch
        %179 = sbr.rel (%p176) target = $region32
      $region31: #{tpu_custom_call.1} parent=5 // pred_region
        %s180 = ssub.s32 %s15, 1
        %s181 = sand.u32 %s63, 1
        %s182 = scalar_lea.sflag [#allocation3], %s181
        %s183 = sand.u32 %s63, 1
        %s184 = smul.addr %s183, 40
        %s185 = scalar_lea.vmem [#allocation2], %s184
        // Predicated region
        $region33: #{tpu_custom_call.1} parent=31 // pred_check
          %p186 = pneg %p76
        $region34: #{tpu_custom_call.1} parent=31 // pred_check_branch
          %188 = sbr.rel (%p186) target = $region36
        $region35: #{tpu_custom_call.1} parent=31 // pred_region
          %190 = dma.done %s182, 640
        $region36: #{tpu_custom_call.1} parent=31 // pred_fallthru
          _
        %p191 = pneg %p48
        %p192 = pneg %p45
        %s193 = sand.u32 %s63, 1
        %s194 = scalar_lea.sflag [#allocation3], %s193
        %s195 = sand.u32 %s63, 1
        %s196 = smul.addr %s195, 40
        %s197 = scalar_lea.vmem [#allocation2], %s196
        %p198 = pneg %p76
        %p199 = pneg %p73
        %p200 = pneg %p97
        %p201 = pneg %p94
        %p202 = pneg %p125
        %p203 = pneg %p122
        %s204 = sand.u32 %s112, 1
        %s205 = scalar_lea.sflag [#allocation4], %s204
        %s206 = sand.u32 %s112, 1
        %s207 = smul.addr %s206, 16
        %s208 = scalar_lea.vmem [#allocation5], %s207
        %s209 = smul.u32 2, %s25
        %s210 = smul.u32 2, %s25
        %v212 = vld [vmem:[%s0] sm:$0xf]
        %v213 = vld [vmem:[%s185] sm:$0xff]
        %v214 = vld [vmem:[%s185 + $0x8] sm:$0xff]
        %v215 = vld [vmem:[%s185 + $0x10] sm:$0xff]
        %v216 = vld [vmem:[%s185 + $0x18] sm:$0xff]
        %v217 = vld [vmem:[%s185 + $0x20] sm:$0xff]
        %v218 = vld [vmem:[%s2] sm:$0xff]
        %220 = vset.pattern.permute.xlu0 0
        %221 = vperm.xlu0 %220, %v218
        %v222 = vpop.permute.xlu0 %221
        %v229 = vunpack.c.l.b16 %v213
        %v230 = vunpack.c.h.b16 %v213
        %v231 = vunpack.c.l.b16 %v214
        %v232 = vunpack.c.h.b16 %v214
        %v233 = vunpack.c.l.b16 %v215
        %v234 = vunpack.c.h.b16 %v215
        %v235 = vunpack.c.l.b16 %v216
        %v236 = vunpack.c.h.b16 %v216
        %v237 = vunpack.c.l.b16 %v217
        %v238 = vunpack.c.h.b16 %v217
        %v239 = vpack.c.b16 %v231, %v229
        %v240 = vpack.c.b16 %v232, %v230
        %v241 = vpack.c.b16 %v235, %v233
        %v242 = vpack.c.b16 %v236, %v234
        %v243 = vpack.c.b16 %v237, %v237
        %v244 = vpack.c.b16 %v238, %v238
        %vm249 = vcmask 326656
        %v251 = vsel %vm249, %v212, 0
        %vm253 = vcmask 1043456
        %v255 = vsel %vm253, %v243, 0
        %v258 = vsel %vm253, %v244, 0
        %260 = vmatpush.bf16.msra.mxu0 0
        %261 = vmatpush.bf16.msra.mxu0 0
        %262 = vmatpush.bf16.msra.mxu0 0
        %263 = vmatpush.bf16.msra.mxu0 0
        %264 = vmatpush.bf16.msra.mxu0 0
        %265 = vmatpush.bf16.msra.mxu0 %v255
        %266 = vmatpush.bf16.msra.mxu0 %v241
        %267 = vmatpush.bf16.msra.mxu0 %v239
        %268 = vmatmul.bf16.gmra.mxu0 %v251
        %v269 = vpop.f32.mrf.mxu0
        %v270 = vadd.f32 %v222, %v269
        %v271 = vpop.f32.mrf.mxu0
        %272 = vdwg.mxu0
        %273 = vmatpush.bf16.msra.mxu0 0
        %274 = vmatpush.bf16.msra.mxu0 0
        %275 = vmatpush.bf16.msra.mxu0 0
        %276 = vmatpush.bf16.msra.mxu0 0
        %277 = vmatpush.bf16.msra.mxu0 0
        %278 = vmatpush.bf16.msra.mxu0 %v258
        %279 = vmatpush.bf16.msra.mxu0 %v242
        %280 = vmatpush.bf16.msra.mxu0 %v240
        %281 = vmatmul.bf16.gmra.mxu0 %v251
        %v282 = vpop.f32.mrf.mxu0
        %v283 = vadd.f32 %v222, %v282
        %v284 = vpop.f32.mrf.mxu0
        %285 = vdwg.mxu0
        %v286 = vmax.f32 %v270, 0.0
        %v287 = vmax.f32 %v283, 0.0
        %288 = vst [vmem:[%s208] sm:$0xff] %v286
        %289 = vst [vmem:[%s208 + $0x8] sm:$0xff] %v287
        %s290 = sand.u32 %s112, 1
        %s291 = scalar_lea.sflag [#allocation4], %s290
        %s292 = sand.u32 %s112, 1
        %s293 = smul.addr %s292, 16
        %s294 = scalar_lea.vmem [#allocation5], %s293
        // Predicated region
        $region37: #{tpu_custom_call.1} parent=31 // pred_check
          %p295 = pneg %p122
        $region38: #{tpu_custom_call.1} parent=31 // pred_check_branch
          %297 = sbr.rel (%p295) target = $region40
        $region39: #{tpu_custom_call.1} parent=31 // pred_region
          %s298 = smul.u32 2, %s25
          %300 = vsyncadd %s291, 0
          %s301 = smul.addr %s24, 2
          %s302 = sadd.s32 %s298, %s301
          %s303 = smul.addr %s302, 8
          %s304 = scalar_lea.hbm %s3, %s303
          %s306 = sshll.u32 %s294, 4
          %s307 = int_to_ptr.vmem [resolvable:$true] %s306
          %s308 = sshll.u32 %s304, 4
          %s309 = int_to_ptr.hbm [resolvable:$true] %s308
          %311 = dma.vmem_to_hbm [thread:$0]  %s307, 256, %s309, %s291
        $region40: #{tpu_custom_call.1} parent=31 // pred_fallthru
          _
      $region32: #{tpu_custom_call.1} parent=5 // pred_fallthru
        _
      %p312 = scmp.le.s32.totalorder 2, %s15
      // Predicated region
      $region41: #{tpu_custom_call.1} parent=5 // pred_check
        %p313 = pneg %p312
      $region42: #{tpu_custom_call.1} parent=5 // pred_check_branch
        %315 = sbr.rel (%p313) target = $region44
      $region43: #{tpu_custom_call.1} parent=5 // pred_region
        %s316 = ssub.s32 %s15, 2
        // Predicated region
        $region45: #{tpu_custom_call.1} parent=43 // pred_check
          %p317 = pneg %p128
        $region46: #{tpu_custom_call.1} parent=43 // pred_check_branch
          %319 = sbr.rel (%p317) target = $region48
        $region47: #{tpu_custom_call.1} parent=43 // pred_region
          %s320 = sand.u32 %s113, 1
          %s321 = scalar_lea.sflag [#allocation4], %s320
          %s322 = sand.u32 %s113, 1
          %s323 = smul.addr %s322, 16
          %s324 = scalar_lea.vmem [#allocation5], %s323
          %326 = dma.done %s321, 256
        $region48: #{tpu_custom_call.1} parent=43 // pred_fallthru
          _
      $region44: #{tpu_custom_call.1} parent=5 // pred_fallthru
        _
    $region6: #{tpu_custom_call.1} parent=1 // loop_footer
      %s19 = sadd.s32 1, %s15
    $region7: #{tpu_custom_call.1} parent=1 // loop_footer_branch
      %14 = sbr.rel target = $region3
    $region8: #{tpu_custom_call.1} parent=1 // loop_exit
      _
    %327 = vsyncpa [#allocation3], 1
    %s328 = scalar_lea.sflag [#allocation3], 1
    %329 = vsyncpa %s328, 1
    %330 = vsyncpa [#allocation4], 1
    %s331 = scalar_lea.sflag [#allocation4], 1
    %332 = vsyncpa %s331, 1

</llo_original>
